<compile_context>
chip_gen: v5e
topology: v5e:2x2
jax: 0.10.0
libtpu: 0.0.40
codegen_flags: <defaults>
</compile_context>

<pallas_src>
import functools

import jax
import jax.numpy as jnp
from jax.experimental import pallas as pl
from jax.experimental.pallas import tpu as pltpu


def _actor_critic_kernel(H, W,
                         x_ref, feat_ref,
                         w1_ref, b1_ref, w2_ref, b2_ref,
                         wfc_ref, bfc_ref, whead_ref, bhead_ref,
                         probs_ref, value_ref):
    Cin = x_ref.shape[0]
    OC = w1_ref.shape[0]
    A = probs_ref.shape[1]
    Ho2, Wo2 = H - 4, W - 4
    Hp, Wp = Ho2 // 2, Wo2 // 2

    # Tap offsets in the row-major flattened (h*W + w) spatial index.
    offs = [dy * W + dx for dy in range(3) for dx in range(3)]

    # --- conv1 + relu: one im2col matmul over a full-width (H x W) output grid.
    # Rows >= H-2 and cols >= W-2 of the output grid are garbage; they are never
    # read by any valid conv2 output.
    P1 = H * W
    patches1 = jnp.concatenate([x_ref[:, o:o + P1] for o in offs], axis=0)  # (9*Cin, P1)
    a1 = jnp.dot(w1_ref[...], patches1, preferred_element_type=jnp.float32)
    a1 = jnp.maximum(a1 + b1_ref[...], 0.0)                                 # (OC, H*W)

    # --- conv2 + relu: same trick over an (Ho2 x W) output grid.
    P2 = Ho2 * W
    patches2 = jnp.concatenate([a1[:, o:o + P2] for o in offs], axis=0)     # (9*OC, P2)
    a2 = jnp.dot(w2_ref[...], patches2, preferred_element_type=jnp.float32)
    a2 = jnp.maximum(a2 + b2_ref[...], 0.0)                                 # (OC, Ho2*W)

    # --- 2x2 max-pool (stride 2) over the valid (Ho2, Wo2) region, vectorized.
    a2v = a2[:, :2 * Hp * W].reshape(OC, Hp, 2 * W)          # split H into (Hp, 2)
    rp = jnp.maximum(a2v[:, :, :W], a2v[:, :, W:])           # (OC, Hp, W) row-pooled
    cp = jnp.max(rp[:, :, :2 * Wp].reshape(OC, Hp, Wp, 2), axis=-1)  # (OC, Hp, Wp)
    flat = cp.reshape(1, OC * Hp * Wp)                       # CHW order == nn.Flatten

    # --- fc + relu: image part and features fused into a single matmul.
    xin = jnp.concatenate([flat, feat_ref[...]], axis=1)     # (1, OC*Hp*Wp + F)
    h = jnp.dot(xin, wfc_ref[...], preferred_element_type=jnp.float32)
    h = jnp.maximum(h + bfc_ref[...], 0.0)                   # (1, 128)

    # --- fused policy + value head: one (128, A+1) matmul, then split.
    out = jnp.dot(h, whead_ref[...], preferred_element_type=jnp.float32) + bhead_ref[...]
    logits = out[:, :A]
    m = jnp.max(logits, axis=-1, keepdims=True)
    e = jnp.exp(logits - m)
    probs_ref[...] = e / jnp.sum(e, axis=-1, keepdims=True)
    value_ref[...] = out[:, A:A + 1]


def actor_critic_pallas(x_hwc, features, params):
    """x_hwc: (H, W, Cin) float32; features: (1, feature_dim) float32."""
    H, W, Cin = x_hwc.shape
    OC = params["w1"].shape[0]
    A = params["wpol"].shape[0]
    F = features.shape[1]

    # --- glue: layout transforms in plain JAX (channels-first, flattened) ---
    # Pad the flattened spatial axis so every tap slice [off, off + H*W) with
    # off <= 2*W + 2 stays in bounds (pad values only ever reach garbage outputs).
    LX = H * W + 2 * W + 2
    x_cf = jnp.transpose(x_hwc.astype(jnp.float32), (2, 0, 1)).reshape(Cin, H * W)
    x_cf = jnp.pad(x_cf, ((0, 0), (0, LX - H * W)))

    # conv weights: OIHW -> (OC, (dy*3+dx)*Cin + c), matching the patch row order.
    w1 = jnp.transpose(params["w1"], (0, 2, 3, 1)).reshape(OC, 9 * Cin)
    w2 = jnp.transpose(params["w2"], (0, 2, 3, 1)).reshape(OC, 9 * OC)
    b1 = params["b1"].reshape(OC, 1)
    b2 = params["b2"].reshape(OC, 1)
    # fc: (128, OC*Hp*Wp + F) -> (in, 128); row order already CHW-then-features,
    # matching the in-kernel CHW flatten (no permutation needed).
    wfc = params["wfc"].T
    bfc = params["bfc"].reshape(1, 128)
    # fused heads: (128, A) | (128, 1) -> (128, A+1)
    whead = jnp.concatenate([params["wpol"].T, params["wval"].T], axis=1)
    bhead = jnp.concatenate([params["bpol"], params["bval"]]).reshape(1, A + 1)

    kernel = functools.partial(_actor_critic_kernel, H, W)
    vmem = pl.BlockSpec(memory_space=pltpu.MemorySpace.VMEM)
    probs, value = pl.pallas_call(
        kernel,
        out_shape=(jax.ShapeDtypeStruct((1, A), jnp.float32),
                   jax.ShapeDtypeStruct((1, 1), jnp.float32)),
        in_specs=[vmem] * 10,
        out_specs=(vmem, vmem),
    )(x_cf, features.astype(jnp.float32), w1, b1, w2, b2, wfc, bfc, whead, bhead)
    return probs, value


def reference_forward(x_hwc, features, p):
    """Pure-JAX reference with PyTorch NCHW semantics (for correctness check)."""
    x = x_hwc[None].transpose(0, 3, 1, 2)                       # (1, C, H, W)

    def conv(x, w, b):
        y = jax.lax.conv_general_dilated(
            x, w, (1, 1), "VALID",
            dimension_numbers=("NCHW", "OIHW", "NCHW"))
        return jax.nn.relu(y + b[None, :, None, None])

    x = conv(x, p["w1"], p["b1"])
    x = conv(x, p["w2"], p["b2"])
    x = jax.lax.reduce_window(x, -jnp.inf, jax.lax.max,
                              (1, 1, 2, 2), (1, 1, 2, 2), "VALID")
    x = x.reshape(1, -1)                                        # CHW flatten
    x = jnp.concatenate([x, features], axis=1)
    h = jax.nn.relu(x @ p["wfc"].T + p["bfc"])
    probs = jax.nn.softmax(h @ p["wpol"].T + p["bpol"], axis=-1)
    value = h @ p["wval"].T + p["bval"]
    return probs, value


def init_params(key, in_channels, out_channels, num_actions, feature_dim, Hp, Wp):
    ks = jax.random.split(key, 10)

    def n(k, shape, scale=0.1):
        return scale * jax.random.normal(k, shape, jnp.float32)

    fc_in = out_channels * Hp * Wp + feature_dim
    return dict(
        w1=n(ks[0], (out_channels, in_channels, 3, 3)),
        b1=n(ks[1], (out_channels,)),
        w2=n(ks[2], (out_channels, out_channels, 3, 3)),
        b2=n(ks[3], (out_channels,)),
        wfc=n(ks[4], (128, fc_in)),
        bfc=n(ks[5], (128,)),
        wpol=n(ks[6], (num_actions, 128)),
        bpol=n(ks[7], (num_actions,)),
        wval=n(ks[8], (1, 128)),
        bval=n(ks[9], (1,)),
    )


if __name__ == "__main__":
    in_channels, out_channels = 4, 8
    H = W = 12
    num_actions, feature_dim = 6, 8
    Hp = Wp = (H - 4) // 2

    key = jax.random.PRNGKey(0)
    kx, kf, kp, ksample = jax.random.split(key, 4)
    # x is HWC (the module's forward adds batch=1 and permutes to NCHW itself)
    x = jax.random.normal(kx, (H, W, in_channels), jnp.float32)
    features = jax.random.normal(kf, (1, feature_dim), jnp.float32)
    params = init_params(kp, in_channels, out_channels, num_actions,
                         feature_dim, Hp, Wp)

    probs, value = actor_critic_pallas(x, features, params)
    probs, value = jax.block_until_ready((probs, value))

    ref_probs, ref_value = reference_forward(x, features, params)
    assert jnp.allclose(probs, ref_probs, atol=5e-3, rtol=5e-3), (probs, ref_probs)
    assert jnp.allclose(value, ref_value, atol=5e-3, rtol=5e-3), (value, ref_value)

    # TODO(synk): th.multinomial(...).item() is host-side categorical sampling;
    # it has no Pallas equivalent so it is done with jax.random.categorical in glue.
    action = int(jax.random.categorical(ksample, jnp.log(probs[0])))
    log_prob = jnp.log(probs[0, action])
    jax.block_until_ready((value, log_prob))

    print("KERNEL_OK")
</pallas_src>

<mosaic_0001>
module attributes {stable_mosaic.version = 11 : i64} {
  func.func @_actor_critic_kernel(%arg0: memref<4x170xf32, #tpu.memory_space<vmem>>, %arg1: memref<1x8xf32, #tpu.memory_space<vmem>>, %arg2: memref<8x36xf32, #tpu.memory_space<vmem>>, %arg3: memref<8x1xf32, #tpu.memory_space<vmem>>, %arg4: memref<8x72xf32, #tpu.memory_space<vmem>>, %arg5: memref<8x1xf32, #tpu.memory_space<vmem>>, %arg6: memref<136x128xf32, #tpu.memory_space<vmem>>, %arg7: memref<1x128xf32, #tpu.memory_space<vmem>>, %arg8: memref<128x7xf32, #tpu.memory_space<vmem>>, %arg9: memref<1x7xf32, #tpu.memory_space<vmem>>, %arg10: memref<1x6xf32, #tpu.memory_space<vmem>>, %arg11: memref<1x1xf32, #tpu.memory_space<vmem>>) attributes {dimension_semantics = [], scalar_prefetch = 0 : i64, scratch_operands = 0 : i64, tpu.core_type = #tpu.core_type<tc>} {
    %c0 = arith.constant 0 : index
    %c0_0 = arith.constant 0 : index
    %0 = vector.load %arg0[%c0, %c0_0] : memref<4x170xf32, #tpu.memory_space<vmem>>, vector<4x144xf32>
    %c0_1 = arith.constant 0 : index
    %c1 = arith.constant 1 : index
    %1 = vector.load %arg0[%c0_1, %c1] : memref<4x170xf32, #tpu.memory_space<vmem>>, vector<4x144xf32>
    %c0_2 = arith.constant 0 : index
    %c2 = arith.constant 2 : index
    %2 = vector.load %arg0[%c0_2, %c2] : memref<4x170xf32, #tpu.memory_space<vmem>>, vector<4x144xf32>
    %c0_3 = arith.constant 0 : index
    %c12 = arith.constant 12 : index
    %3 = vector.load %arg0[%c0_3, %c12] : memref<4x170xf32, #tpu.memory_space<vmem>>, vector<4x144xf32>
    %c0_4 = arith.constant 0 : index
    %c13 = arith.constant 13 : index
    %4 = vector.load %arg0[%c0_4, %c13] : memref<4x170xf32, #tpu.memory_space<vmem>>, vector<4x144xf32>
    %c0_5 = arith.constant 0 : index
    %c14 = arith.constant 14 : index
    %5 = vector.load %arg0[%c0_5, %c14] : memref<4x170xf32, #tpu.memory_space<vmem>>, vector<4x144xf32>
    %c0_6 = arith.constant 0 : index
    %c24 = arith.constant 24 : index
    %6 = vector.load %arg0[%c0_6, %c24] : memref<4x170xf32, #tpu.memory_space<vmem>>, vector<4x144xf32>
    %c0_7 = arith.constant 0 : index
    %c25 = arith.constant 25 : index
    %7 = vector.load %arg0[%c0_7, %c25] : memref<4x170xf32, #tpu.memory_space<vmem>>, vector<4x144xf32>
    %c0_8 = arith.constant 0 : index
    %c26 = arith.constant 26 : index
    %8 = vector.load %arg0[%c0_8, %c26] : memref<4x170xf32, #tpu.memory_space<vmem>>, vector<4x144xf32>
    %9 = tpu.concatenate %0, %1, %2, %3, %4, %5, %6, %7, %8 in 0 : vector<4x144xf32>, vector<4x144xf32>, vector<4x144xf32>, vector<4x144xf32>, vector<4x144xf32>, vector<4x144xf32>, vector<4x144xf32>, vector<4x144xf32>, vector<4x144xf32> -> vector<36x144xf32>
    %c0_9 = arith.constant 0 : index
    %c0_10 = arith.constant 0 : index
    %10 = vector.load %arg2[%c0_9, %c0_10] : memref<8x36xf32, #tpu.memory_space<vmem>>, vector<8x36xf32>
    %cst = arith.constant dense<0.000000e+00> : vector<8x144xf32>
    %11 = tpu.matmul %10, %9, %cst {dimension_numbers = #tpu.dot_dimension_numbers<[1], [0], [0], [1], [0, 0, 1, 1], [], []>} : vector<8x36xf32>, vector<36x144xf32>, vector<8x144xf32> -> vector<8x144xf32>
    %c0_11 = arith.constant 0 : index
    %c0_12 = arith.constant 0 : index
    %12 = vector.load %arg3[%c0_11, %c0_12] : memref<8x1xf32, #tpu.memory_space<vmem>>, vector<8x1xf32>
    %13 = vector.broadcast %12 : vector<8x1xf32> to vector<8x144xf32>
    %14 = arith.addf %11, %13 : vector<8x144xf32>
    %cst_13 = arith.constant 0.000000e+00 : f32
    %15 = vector.broadcast %cst_13 : f32 to vector<8x144xf32>
    %16 = arith.maximumf %14, %15 : vector<8x144xf32>
    %17 = vector.extract_strided_slice %16 {offsets = [0, 0], sizes = [8, 96], strides = [1, 1]} : vector<8x144xf32> to vector<8x96xf32>
    %18 = vector.extract_strided_slice %16 {offsets = [0, 1], sizes = [8, 96], strides = [1, 1]} : vector<8x144xf32> to vector<8x96xf32>
    %19 = vector.extract_strided_slice %16 {offsets = [0, 2], sizes = [8, 96], strides = [1, 1]} : vector<8x144xf32> to vector<8x96xf32>
    %20 = vector.extract_strided_slice %16 {offsets = [0, 12], sizes = [8, 96], strides = [1, 1]} : vector<8x144xf32> to vector<8x96xf32>
    %21 = vector.extract_strided_slice %16 {offsets = [0, 13], sizes = [8, 96], strides = [1, 1]} : vector<8x144xf32> to vector<8x96xf32>
    %22 = vector.extract_strided_slice %16 {offsets = [0, 14], sizes = [8, 96], strides = [1, 1]} : vector<8x144xf32> to vector<8x96xf32>
    %23 = vector.extract_strided_slice %16 {offsets = [0, 24], sizes = [8, 96], strides = [1, 1]} : vector<8x144xf32> to vector<8x96xf32>
    %24 = vector.extract_strided_slice %16 {offsets = [0, 25], sizes = [8, 96], strides = [1, 1]} : vector<8x144xf32> to vector<8x96xf32>
    %25 = vector.extract_strided_slice %16 {offsets = [0, 26], sizes = [8, 96], strides = [1, 1]} : vector<8x144xf32> to vector<8x96xf32>
    %26 = tpu.concatenate %17, %18, %19, %20, %21, %22, %23, %24, %25 in 0 : vector<8x96xf32>, vector<8x96xf32>, vector<8x96xf32>, vector<8x96xf32>, vector<8x96xf32>, vector<8x96xf32>, vector<8x96xf32>, vector<8x96xf32>, vector<8x96xf32> -> vector<72x96xf32>
    %c0_14 = arith.constant 0 : index
    %c0_15 = arith.constant 0 : index
    %27 = vector.load %arg4[%c0_14, %c0_15] : memref<8x72xf32, #tpu.memory_space<vmem>>, vector<8x72xf32>
    %cst_16 = arith.constant dense<0.000000e+00> : vector<8x96xf32>
    %28 = tpu.matmul %27, %26, %cst_16 {dimension_numbers = #tpu.dot_dimension_numbers<[1], [0], [0], [1], [0, 0, 1, 1], [], []>} : vector<8x72xf32>, vector<72x96xf32>, vector<8x96xf32> -> vector<8x96xf32>
    %c0_17 = arith.constant 0 : index
    %c0_18 = arith.constant 0 : index
    %29 = vector.load %arg5[%c0_17, %c0_18] : memref<8x1xf32, #tpu.memory_space<vmem>>, vector<8x1xf32>
    %30 = vector.broadcast %29 : vector<8x1xf32> to vector<8x96xf32>
    %31 = arith.addf %28, %30 : vector<8x96xf32>
    %cst_19 = arith.constant 0.000000e+00 : f32
    %32 = vector.broadcast %cst_19 : f32 to vector<8x96xf32>
    %33 = arith.maximumf %31, %32 : vector<8x96xf32>
    %34 = vector.shape_cast %33 : vector<8x96xf32> to vector<8x4x24xf32>
    %35 = vector.extract_strided_slice %34 {offsets = [0, 0, 0], sizes = [8, 4, 12], strides = [1, 1, 1]} : vector<8x4x24xf32> to vector<8x4x12xf32>
    %36 = vector.extract_strided_slice %34 {offsets = [0, 0, 12], sizes = [8, 4, 12], strides = [1, 1, 1]} : vector<8x4x24xf32> to vector<8x4x12xf32>
    %37 = arith.maximumf %35, %36 : vector<8x4x12xf32>
    %38 = vector.extract_strided_slice %37 {offsets = [0, 0, 0], sizes = [8, 4, 8], strides = [1, 1, 1]} : vector<8x4x12xf32> to vector<8x4x8xf32>
    %39 = vector.shape_cast %38 : vector<8x4x8xf32> to vector<8x4x4x2xf32>
    %cst_20 = arith.constant dense<0xFF800000> : vector<8x4x4xf32>
    %40 = vector.multi_reduction <maximumf>, %39, %cst_20 [3] : vector<8x4x4x2xf32> to vector<8x4x4xf32>
    %41 = vector.shape_cast %40 : vector<8x4x4xf32> to vector<1x128xf32>
    %c0_21 = arith.constant 0 : index
    %c0_22 = arith.constant 0 : index
    %42 = vector.load %arg1[%c0_21, %c0_22] : memref<1x8xf32, #tpu.memory_space<vmem>>, vector<1x8xf32>
    %43 = tpu.concatenate %41, %42 in 1 : vector<1x128xf32>, vector<1x8xf32> -> vector<1x136xf32>
    %c0_23 = arith.constant 0 : index
    %c0_24 = arith.constant 0 : index
    %44 = vector.load %arg6[%c0_23, %c0_24] : memref<136x128xf32, #tpu.memory_space<vmem>>, vector<136x128xf32>
    %cst_25 = arith.constant dense<0.000000e+00> : vector<1x128xf32>
    %45 = tpu.matmul %43, %44, %cst_25 {dimension_numbers = #tpu.dot_dimension_numbers<[1], [0], [0], [1], [0, 0, 1, 1], [], []>} : vector<1x136xf32>, vector<136x128xf32>, vector<1x128xf32> -> vector<1x128xf32>
    %c0_26 = arith.constant 0 : index
    %c0_27 = arith.constant 0 : index
    %46 = vector.load %arg7[%c0_26, %c0_27] : memref<1x128xf32, #tpu.memory_space<vmem>>, vector<1x128xf32>
    %47 = arith.addf %45, %46 : vector<1x128xf32>
    %cst_28 = arith.constant 0.000000e+00 : f32
    %48 = vector.broadcast %cst_28 : f32 to vector<1x128xf32>
    %49 = arith.maximumf %47, %48 : vector<1x128xf32>
    %c0_29 = arith.constant 0 : index
    %c0_30 = arith.constant 0 : index
    %50 = vector.load %arg8[%c0_29, %c0_30] : memref<128x7xf32, #tpu.memory_space<vmem>>, vector<128x7xf32>
    %cst_31 = arith.constant dense<0.000000e+00> : vector<1x7xf32>
    %51 = tpu.matmul %49, %50, %cst_31 {dimension_numbers = #tpu.dot_dimension_numbers<[1], [0], [0], [1], [0, 0, 1, 1], [], []>} : vector<1x128xf32>, vector<128x7xf32>, vector<1x7xf32> -> vector<1x7xf32>
    %c0_32 = arith.constant 0 : index
    %c0_33 = arith.constant 0 : index
    %52 = vector.load %arg9[%c0_32, %c0_33] : memref<1x7xf32, #tpu.memory_space<vmem>>, vector<1x7xf32>
    %53 = arith.addf %51, %52 : vector<1x7xf32>
    %54 = vector.extract_strided_slice %53 {offsets = [0, 0], sizes = [1, 6], strides = [1, 1]} : vector<1x7xf32> to vector<1x6xf32>
    %cst_34 = arith.constant dense<0xFF800000> : vector<1xf32>
    %55 = vector.multi_reduction <maximumf>, %54, %cst_34 [1] : vector<1x6xf32> to vector<1xf32>
    %56 = vector.shape_cast %55 : vector<1xf32> to vector<1x1xf32>
    %57 = vector.broadcast %56 : vector<1x1xf32> to vector<1x6xf32>
    %58 = arith.subf %54, %57 : vector<1x6xf32>
    %59 = math.exp %58 : vector<1x6xf32>
    %cst_35 = arith.constant dense<0.000000e+00> : vector<1xf32>
    %60 = vector.multi_reduction <add>, %59, %cst_35 [1] : vector<1x6xf32> to vector<1xf32>
    %61 = vector.shape_cast %60 : vector<1xf32> to vector<1x1xf32>
    %62 = vector.broadcast %61 : vector<1x1xf32> to vector<1x6xf32>
    %63 = arith.divf %59, %62 : vector<1x6xf32>
    %c0_36 = arith.constant 0 : index
    %c0_37 = arith.constant 0 : index
    %64 = vector.load %arg10[%c0_36, %c0_37] : memref<1x6xf32, #tpu.memory_space<vmem>>, vector<1x6xf32>
    tpu.vector_store %arg10[%c0_36, %c0_37], %63 {strides = array<i32>} : memref<1x6xf32, #tpu.memory_space<vmem>>, vector<1x6xf32>,
    %65 = vector.extract_strided_slice %53 {offsets = [0, 6], sizes = [1, 1], strides = [1, 1]} : vector<1x7xf32> to vector<1x1xf32>
    %c0_38 = arith.constant 0 : index
    %c0_39 = arith.constant 0 : index
    %66 = vector.load %arg11[%c0_38, %c0_39] : memref<1x1xf32, #tpu.memory_space<vmem>>, vector<1x1xf32>
    tpu.vector_store %arg11[%c0_38, %c0_39], %65 {strides = array<i32>} : memref<1x1xf32, #tpu.memory_space<vmem>>, vector<1x1xf32>,
    return
  }
}

</mosaic_0001>

<llo_original>
// kernel: tpu_custom_call.1
$region0: #{tpu_custom_call.1}
  #allocation0 [shape = 'u32[]', space=smem, size = 0x4, offset = 0x4, fixed_abs, tag = 'smem constant byte address 0x4 - core index']
  #allocation1 [shape = 'u32[72,128]{1,0:T(1,128)}', space=vmem, size = 0x9000, scoped, tag = 'internal scratch']
  %s0 = inlined_call_operand.vmem [shape: f32[4,170], index: 0, kind: input, shape index: {}]
  %s1 = inlined_call_operand.vmem [shape: f32[1,8], index: 1, kind: input, shape index: {}]
  %s2 = inlined_call_operand.hbm [shape: f32[8,36], index: 2, kind: input, shape index: {}]
  %s3 = inlined_call_operand.vmem [shape: f32[8,1], index: 3, kind: input, shape index: {}]
  %s4 = inlined_call_operand.hbm [shape: f32[8,72], index: 4, kind: input, shape index: {}]
  %s5 = inlined_call_operand.vmem [shape: f32[8,1], index: 5, kind: input, shape index: {}]
  %s6 = inlined_call_operand.vmem [shape: f32[136,128], index: 6, kind: input, shape index: {}]
  %s7 = inlined_call_operand.vmem [shape: f32[1,128], index: 7, kind: input, shape index: {}]
  %s8 = inlined_call_operand.vmem [shape: f32[128,7], index: 8, kind: input, shape index: {}]
  %s9 = inlined_call_operand.vmem [shape: f32[1,7], index: 9, kind: input, shape index: {}]
  %s10 = inlined_call_operand.hbm [shape: f32[1,6], index: 10, kind: output, shape index: {0}]
  %s11 = inlined_call_operand.hbm [shape: f32[1,1], index: 11, kind: output, shape index: {1}]
  %12 = xla_tuple %s10, %s11
  %s13 = sld [smem:[#allocation0]]
  $region66: #{tpu_custom_call.1} parent=0
    _
  %s15 = ssub.s32 1, %s13
  %s16 = scalar_select 0, %s15, %s13
  $region1: #{tpu_custom_call.1} parent=0
    #allocation2 [shape = 'u8[4096]{0}', space=vmem, size = 0x1000, scoped, tag = 'input window, operand 2, single buffered']
    #allocation3 [shape = 's32[1]{0}', space=sflag, size = 0x4, scoped, tag = 'scoped memory for tpu_custom_call.1']
    #allocation4 [shape = 's32[1]{0}', space=sflag, size = 0x4, scoped, tag = 'scoped memory for tpu_custom_call.1']
    #allocation5 [shape = 'u8[4096]{0}', space=vmem, size = 0x1000, scoped, tag = 'input window, operand 4, single buffered']
    #allocation6 [shape = 's32[1]{0}', space=sflag, size = 0x4, scoped, tag = 'scoped memory for tpu_custom_call.1']
    #allocation7 [shape = 'u8[512]{0}', space=vmem, size = 0x400, scoped, tag = 'output window, operand 0, single buffered']
    #allocation8 [shape = 'u8[512]{0}', space=vmem, size = 0x400, scoped, tag = 'output window, operand 1, single buffered']
    #allocation9 [shape = 's32[1]{0}', space=sflag, size = 0x4, scoped, tag = 'scoped memory for tpu_custom_call.1']
    %17 = vsyncpa [#allocation3], 0
    %18 = vsyncpa [#allocation6], 0
    %19 = vsyncpa [#allocation4], 0
    %20 = vsyncpa [#allocation9], 0
    // Predicated region
    $region2: #{tpu_custom_call.1} parent=1 // pred_check
      _
    $region3: #{tpu_custom_call.1} parent=1 // pred_check_branch
      %22 = sbr.rel (0) target = $region5
    $region4: #{tpu_custom_call.1} parent=1 // pred_region
      _
    $region5: #{tpu_custom_call.1} parent=1 // pred_fallthru
      _
    // Predicated region
    $region6: #{tpu_custom_call.1} parent=1 // pred_check
      _
    $region7: #{tpu_custom_call.1} parent=1 // pred_check_branch
      %24 = sbr.rel (0) target = $region9
    $region8: #{tpu_custom_call.1} parent=1 // pred_region
      _
    $region9: #{tpu_custom_call.1} parent=1 // pred_fallthru
      _
    // Predicated region
    $region10: #{tpu_custom_call.1} parent=1 // pred_check
      _
    $region11: #{tpu_custom_call.1} parent=1 // pred_check_branch
      %26 = sbr.rel (0) target = $region13
    $region12: #{tpu_custom_call.1} parent=1 // pred_region
      %28 = vsyncadd [#allocation3], 0
      %s30 = sshll.u32 %s2, 4
      %s31 = int_to_ptr.hbm [resolvable:$true] %s30
      %s32 = sshll.u32 [#allocation2], 4
      %s33 = int_to_ptr.vmem [resolvable:$true] %s32
      %35 = dma.hbm_to_vmem [thread:$0]  %s31, 128, %s33, [#allocation3]
    $region13: #{tpu_custom_call.1} parent=1 // pred_fallthru
      _
    // Predicated region
    $region14: #{tpu_custom_call.1} parent=1 // pred_check
      _
    $region15: #{tpu_custom_call.1} parent=1 // pred_check_branch
      %37 = sbr.rel (0) target = $region17
    $region16: #{tpu_custom_call.1} parent=1 // pred_region
      _
    $region17: #{tpu_custom_call.1} parent=1 // pred_fallthru
      _
    // Predicated region
    $region18: #{tpu_custom_call.1} parent=1 // pred_check
      _
    $region19: #{tpu_custom_call.1} parent=1 // pred_check_branch
      %39 = sbr.rel (0) target = $region21
    $region20: #{tpu_custom_call.1} parent=1 // pred_region
      %41 = vsyncadd [#allocation6], 0
      %s43 = sshll.u32 %s4, 4
      %s44 = int_to_ptr.hbm [resolvable:$true] %s43
      %s45 = sshll.u32 [#allocation5], 4
      %s46 = int_to_ptr.vmem [resolvable:$true] %s45
      %48 = dma.hbm_to_vmem [thread:$0]  %s44, 128, %s46, [#allocation6]
    $region21: #{tpu_custom_call.1} parent=1 // pred_fallthru
      _
    // Predicated region
    $region22: #{tpu_custom_call.1} parent=1 // pred_check
      _
    $region23: #{tpu_custom_call.1} parent=1 // pred_check_branch
      %50 = sbr.rel (0) target = $region25
    $region24: #{tpu_custom_call.1} parent=1 // pred_region
      _
    $region25: #{tpu_custom_call.1} parent=1 // pred_fallthru
      _
    // Predicated region
    $region26: #{tpu_custom_call.1} parent=1 // pred_check
      _
    $region27: #{tpu_custom_call.1} parent=1 // pred_check_branch
      %52 = sbr.rel (0) target = $region29
    $region28: #{tpu_custom_call.1} parent=1 // pred_region
      _
    $region29: #{tpu_custom_call.1} parent=1 // pred_fallthru
      _
    // Predicated region
    $region30: #{tpu_custom_call.1} parent=1 // pred_check
      _
    $region31: #{tpu_custom_call.1} parent=1 // pred_check_branch
      %54 = sbr.rel (0) target = $region33
    $region32: #{tpu_custom_call.1} parent=1 // pred_region
      _
    $region33: #{tpu_custom_call.1} parent=1 // pred_fallthru
      _
    // Predicated region
    $region34: #{tpu_custom_call.1} parent=1 // pred_check
      _
    $region35: #{tpu_custom_call.1} parent=1 // pred_check_branch
      %56 = sbr.rel (0) target = $region37
    $region36: #{tpu_custom_call.1} parent=1 // pred_region
      _
    $region37: #{tpu_custom_call.1} parent=1 // pred_fallthru
      _
    // Predicated region
    $region38: #{tpu_custom_call.1} parent=1 // pred_check
      _
    $region39: #{tpu_custom_call.1} parent=1 // pred_check_branch
      %58 = sbr.rel (0) target = $region41
    $region40: #{tpu_custom_call.1} parent=1 // pred_region
      _
    $region41: #{tpu_custom_call.1} parent=1 // pred_fallthru
      _
    // Predicated region
    $region42: #{tpu_custom_call.1} parent=1 // pred_check
      _
    $region43: #{tpu_custom_call.1} parent=1 // pred_check_branch
      %60 = sbr.rel (0) target = $region45
    $region44: #{tpu_custom_call.1} parent=1 // pred_region
      %62 = dma.done [#allocation3], 128
    $region45: #{tpu_custom_call.1} parent=1 // pred_fallthru
      _
    // Predicated region
    $region46: #{tpu_custom_call.1} parent=1 // pred_check
      _
    $region47: #{tpu_custom_call.1} parent=1 // pred_check_branch
      %64 = sbr.rel (0) target = $region49
    $region48: #{tpu_custom_call.1} parent=1 // pred_region
      %66 = dma.done [#allocation6], 128
    $region49: #{tpu_custom_call.1} parent=1 // pred_fallthru
      _
    %v67 = vld [vmem:[%s0] sm:$0xff]
    %69 = vst [vmem:[#allocation1] ss:$2 sm:$0xff] %v67
    %v70 = vld.sshfl [vmem:[#allocation1] sm:$0xff pattern:$0x75316420]
    %s72 = scalar_lea.vmem [#allocation1], 1
    %73 = vst [vmem:[%s72] ss:$2 sm:$0xff] %v67
    %v74 = vld.sshfl [vmem:[#allocation1] sm:$0xff pattern:$0x75316420]
    %v75 = vld.sshfl [vmem:[#allocation1 + $0x8] sm:$0xff pattern:$0x75316420]
    %76 = vrot.lane.b32.xlu0 %v74, 127
    %v77 = vpop.permute.xlu0 %76
    %78 = vrot.lane.b32.xlu0 %v75, 127
    %v79 = vpop.permute.xlu0 %78
    %vm80 = vcmask 1039360
    %v81 = vsel %vm80, %v77, %v79
    %83 = vst [vmem:[#allocation1] ss:$2 sm:$0xff] %v67
    %v84 = vld.sshfl [vmem:[#allocation1] sm:$0xff pattern:$0x75316420]
    %v85 = vld.sshfl [vmem:[#allocation1 + $0x8] sm:$0xff pattern:$0x75316420]
    %86 = vrot.lane.b32.xlu0 %v84, 126
    %v87 = vpop.permute.xlu0 %86
    %88 = vrot.lane.b32.xlu0 %v85, 126
    %v89 = vpop.permute.xlu0 %88
    %vm90 = vcmask 1031168
    %v91 = vsel %vm90, %v87, %v89
    %s93 = scalar_lea.vmem [#allocation1], 1
    %94 = vst [vmem:[%s93] ss:$2 sm:$0xff] %v67
    %v95 = vld.sshfl [vmem:[#allocation1] sm:$0xff pattern:$0x75316420]
    %v96 = vld.sshfl [vmem:[#allocation1 + $0x8] sm:$0xff pattern:$0x75316420]
    %97 = vrot.lane.b32.xlu0 %v95, 116
    %v98 = vpop.permute.xlu0 %97
    %99 = vrot.lane.b32.xlu0 %v96, 116
    %v100 = vpop.permute.xlu0 %99
    %vm101 = vcmask 949248
    %v102 = vsel %vm101, %v98, %v100
    %104 = vst [vmem:[#allocation1] ss:$2 sm:$0xff] %v67
    %v105 = vld.sshfl [vmem:[#allocation1] sm:$0xff pattern:$0x75316420]
    %v106 = vld.sshfl [vmem:[#allocation1 + $0x8] sm:$0xff pattern:$0x75316420]
    %107 = vrot.lane.b32.xlu0 %v105, 115
    %v108 = vpop.permute.xlu0 %107
    %109 = vrot.lane.b32.xlu0 %v106, 115
    %v110 = vpop.permute.xlu0 %109
    %vm111 = vcmask 941056
    %v112 = vsel %vm111, %v108, %v110
    %s114 = scalar_lea.vmem [#allocation1], 1
    %115 = vst [vmem:[%s114] ss:$2 sm:$0xff] %v67
    %v116 = vld.sshfl [vmem:[#allocation1] sm:$0xff pattern:$0x75316420]
    %v117 = vld.sshfl [vmem:[#allocation1 + $0x8] sm:$0xff pattern:$0x75316420]
    %118 = vrot.lane.b32.xlu0 %v116, 114
    %v119 = vpop.permute.xlu0 %118
    %120 = vrot.lane.b32.xlu0 %v117, 114
    %v121 = vpop.permute.xlu0 %120
    %vm122 = vcmask 932864
    %v123 = vsel %vm122, %v119, %v121
    %125 = vst [vmem:[#allocation1] ss:$2 sm:$0xff] %v67
    %v126 = vld.sshfl [vmem:[#allocation1] sm:$0xff pattern:$0x75316420]
    %v127 = vld.sshfl [vmem:[#allocation1 + $0x8] sm:$0xff pattern:$0x75316420]
    %128 = vrot.lane.b32.xlu0 %v126, 104
    %v129 = vpop.permute.xlu0 %128
    %130 = vrot.lane.b32.xlu0 %v127, 104
    %v131 = vpop.permute.xlu0 %130
    %vm132 = vcmask 850944
    %v133 = vsel %vm132, %v129, %v131
    %s135 = scalar_lea.vmem [#allocation1], 1
    %136 = vst [vmem:[%s135] ss:$2 sm:$0xff] %v67
    %v137 = vld.sshfl [vmem:[#allocation1] sm:$0xff pattern:$0x75316420]
    %v138 = vld.sshfl [vmem:[#allocation1 + $0x8] sm:$0xff pattern:$0x75316420]
    %139 = vrot.lane.b32.xlu0 %v137, 103
    %v140 = vpop.permute.xlu0 %139
    %141 = vrot.lane.b32.xlu0 %v138, 103
    %v142 = vpop.permute.xlu0 %141
    %vm143 = vcmask 842752
    %v144 = vsel %vm143, %v140, %v142
    %146 = vst [vmem:[#allocation1] ss:$2 sm:$0xff] %v67
    %v147 = vld.sshfl [vmem:[#allocation1] sm:$0xff pattern:$0x75316420]
    %v148 = vld.sshfl [vmem:[#allocation1 + $0x8] sm:$0xff pattern:$0x75316420]
    %149 = vrot.lane.b32.xlu0 %v147, 102
    %v150 = vpop.permute.xlu0 %149
    %151 = vrot.lane.b32.xlu0 %v148, 102
    %v152 = vpop.permute.xlu0 %151
    %vm153 = vcmask 834560
    %v154 = vsel %vm153, %v150, %v152
    %vm155 = vcmask 1043456
    %v156 = vsel %vm155, %v70, %v81
    %v157 = vsel %vm155, %v91, %v102
    %v158 = vsel %vm155, %v112, %v123
    %v159 = vsel %vm155, %v133, %v144
    %v160 = vld [vmem:[#allocation2] sm:$0xff]
    %v161 = vld [vmem:[%s3] sm:$0xff]
    %163 = vset.pattern.permute.xlu0 0
    %164 = vperm.xlu0 %163, %v161
    %v165 = vpop.permute.xlu0 %164
    %vm167 = vcmask 293888
    %v169 = vsel %vm167, %v160, 0
    %v171 = vsel %vm155, %v154, 0
    %173 = vmatpush.msra.mxu0 0.0
    %174 = vmatpush.msra.mxu0 0.0
    %175 = vmatpush.msra.mxu0 0.0
    %176 = vmatpush.msra.mxu0 0.0
    %177 = vmatpush.msra.mxu0 0.0
    %178 = vmatpush.msra.mxu0 0.0
    %179 = vmatpush.msra.mxu0 0.0
    %180 = vmatpush.msra.mxu0 0.0
    %181 = vmatpush.msra.mxu0 0.0
    %182 = vmatpush.msra.mxu0 0.0
    %183 = vmatpush.msra.mxu0 0.0
    %184 = vmatpush.msra.mxu0 %v171
    %185 = vmatpush.msra.mxu0 %v159
    %186 = vmatpush.msra.mxu0 %v158
    %187 = vmatpush.msra.mxu0 %v157
    %188 = vmatpush.msra.mxu0 %v156
    %189 = vmatmul.f32.gmra.mxu0 %v169
    %v190 = vpop.f32.mrf.mxu0
    %v191 = vadd.f32 %v165, %v190
    %192 = vdwg.mxu0
    %v193 = vmax.f32 %v191, 0.0
    %195 = vrot.lane.b32.xlu0 %v193, 127
    %v196 = vpop.permute.xlu0 %195
    %198 = vrot.lane.b32.xlu0 %v193, 126
    %v199 = vpop.permute.xlu0 %198
    %201 = vrot.lane.b32.xlu0 %v193, 116
    %v202 = vpop.permute.xlu0 %201
    %204 = vrot.lane.b32.xlu0 %v193, 115
    %v205 = vpop.permute.xlu0 %204
    %207 = vrot.lane.b32.xlu0 %v193, 114
    %v208 = vpop.permute.xlu0 %207
    %210 = vrot.lane.b32.xlu0 %v193, 104
    %v211 = vpop.permute.xlu0 %210
    %213 = vrot.lane.b32.xlu0 %v193, 103
    %v214 = vpop.permute.xlu0 %213
    %216 = vrot.lane.b32.xlu0 %v193, 102
    %v217 = vpop.permute.xlu0 %216
    %v219 = vld [vmem:[#allocation5] sm:$0xff]
    %v220 = vld [vmem:[%s5] sm:$0xff]
    %222 = vset.pattern.permute.xlu0 0
    %223 = vperm.xlu0 %222, %v220
    %v224 = vpop.permute.xlu0 %223
    %vm226 = vcmask 588800
    %v228 = vsel %vm226, %v219, 0
    %230 = vmatpush.msra.mxu0 0.0
    %231 = vmatpush.msra.mxu0 0.0
    %232 = vmatpush.msra.mxu0 0.0
    %233 = vmatpush.msra.mxu0 0.0
    %234 = vmatpush.msra.mxu0 0.0
    %235 = vmatpush.msra.mxu0 0.0
    %236 = vmatpush.msra.mxu0 0.0
    %237 = vmatpush.msra.mxu0 %v217
    %238 = vmatpush.msra.mxu0 %v214
    %239 = vmatpush.msra.mxu0 %v211
    %240 = vmatpush.msra.mxu0 %v208
    %241 = vmatpush.msra.mxu0 %v205
    %242 = vmatpush.msra.mxu0 %v202
    %243 = vmatpush.msra.mxu0 %v199
    %244 = vmatpush.msra.mxu0 %v196
    %245 = vmatpush.msra.mxu0 %v193
    %246 = vmatmul.f32.gmra.mxu0 %v228
    %v247 = vpop.f32.mrf.mxu0
    %v248 = vadd.f32 %v224, %v247
    %249 = vdwg.mxu0
    %v250 = vmax.f32 %v248, 0.0
    %252 = vrot.lane.b32.xlu0 %v250, 104
    %v253 = vpop.permute.xlu0 %252
    %255 = vrot.lane.b32.xlu0 %v250, 80
    %v256 = vpop.permute.xlu0 %255
    %258 = vrot.lane.b32.xlu0 %v250, 56
    %v259 = vpop.permute.xlu0 %258
    %v261 = vrot.slane %v256, 4
    %vm262 = vcmask 1047556
    %v263 = vsel %vm262, %v261, %v250
    %v264 = vrot.slane %v250, 4
    %v265 = vsel %vm262, %v256, %v264
    %v267 = vunpack.c.l.s4 1983009808
    %v268 = vunpack.c.0.s8 %v267
    %v269 = vperm.slane %v263, %v268
    %v271 = vunpack.c.l.s4 1983009808
    %v272 = vunpack.c.0.s8 %v271
    %v273 = vperm.slane %v265, %v272
    %v274 = vrot.slane %v259, 4
    %v275 = vsel %vm262, %v274, %v253
    %v276 = vrot.slane %v253, 4
    %v277 = vsel %vm262, %v259, %v276
    %v279 = vunpack.c.l.s4 1983009808
    %v280 = vunpack.c.0.s8 %v279
    %v281 = vperm.slane %v275, %v280
    %v283 = vunpack.c.l.s4 1983009808
    %v284 = vunpack.c.0.s8 %v283
    %v285 = vperm.slane %v277, %v284
    %v286 = vrot.slane %v281, 4
    %v287 = vsel %vm262, %v286, %v269
    %v288 = vrot.slane %v269, 4
    %v289 = vsel %vm262, %v281, %v288
    %v291 = vunpack.c.l.s4 1934713408
    %v292 = vunpack.c.0.s8 %v291
    %v293 = vperm.slane %v287, %v292
    %v295 = vunpack.c.l.s4 1934713408
    %v296 = vunpack.c.0.s8 %v295
    %v297 = vperm.slane %v289, %v296
    %v298 = vrot.slane %v285, 4
    %v299 = vsel %vm262, %v298, %v273
    %v300 = vrot.slane %v273, 4
    %v301 = vsel %vm262, %v285, %v300
    %v303 = vunpack.c.l.s4 1934713408
    %v304 = vunpack.c.0.s8 %v303
    %v305 = vperm.slane %v299, %v304
    %v307 = vunpack.c.l.s4 1934713408
    %v308 = vunpack.c.0.s8 %v307
    %v309 = vperm.slane %v301, %v308
    %v310 = vrot.slane %v293, 4
    %v311 = vsel %vm262, 0.0, %v310
    %v312 = vrot.slane %v297, 4
    %v313 = vsel %vm262, 0.0, %v312
    %v314 = vrot.slane %v305, 4
    %v315 = vsel %vm262, 0.0, %v314
    %v316 = vrot.slane %v309, 4
    %v317 = vsel %vm262, 0.0, %v316
    %326 = vrot.lane.b32.xlu0 %v293, 116
    %v327 = vpop.permute.xlu0 %326
    %328 = vrot.lane.b32.xlu0 %v311, 116
    %v329 = vpop.permute.xlu0 %328
    %330 = vrot.lane.b32.xlu0 %v297, 116
    %v331 = vpop.permute.xlu0 %330
    %332 = vrot.lane.b32.xlu0 %v313, 116
    %v333 = vpop.permute.xlu0 %332
    %334 = vrot.lane.b32.xlu0 %v305, 116
    %v335 = vpop.permute.xlu0 %334
    %336 = vrot.lane.b32.xlu0 %v315, 116
    %v337 = vpop.permute.xlu0 %336
    %338 = vrot.lane.b32.xlu0 %v309, 116
    %v339 = vpop.permute.xlu0 %338
    %340 = vrot.lane.b32.xlu0 %v317, 116
    %v341 = vpop.permute.xlu0 %340
    %v350 = vmax.f32 %v293, %v327
    %v351 = vmax.f32 %v311, %v329
    %v352 = vmax.f32 %v297, %v331
    %v353 = vmax.f32 %v313, %v333
    %v354 = vmax.f32 %v305, %v335
    %v355 = vmax.f32 %v315, %v337
    %v356 = vmax.f32 %v309, %v339
    %v357 = vmax.f32 %v317, %v341
    %366 = vrot.lane.b32.xlu0 %v350, 126
    %v367 = vpop.permute.xlu0 %366
    %368 = vrot.lane.b32.xlu0 %v351, 126
    %v369 = vpop.permute.xlu0 %368
    %370 = vrot.lane.b32.xlu0 %v352, 126
    %v371 = vpop.permute.xlu0 %370
    %372 = vrot.lane.b32.xlu0 %v353, 126
    %v373 = vpop.permute.xlu0 %372
    %374 = vrot.lane.b32.xlu0 %v354, 126
    %v375 = vpop.permute.xlu0 %374
    %376 = vrot.lane.b32.xlu0 %v355, 126
    %v377 = vpop.permute.xlu0 %376
    %378 = vrot.lane.b32.xlu0 %v356, 126
    %v379 = vpop.permute.xlu0 %378
    %380 = vrot.lane.b32.xlu0 %v357, 126
    %v381 = vpop.permute.xlu0 %380
    %390 = vrot.lane.b32.xlu0 %v350, 124
    %v391 = vpop.permute.xlu0 %390
    %392 = vrot.lane.b32.xlu0 %v351, 124
    %v393 = vpop.permute.xlu0 %392
    %394 = vrot.lane.b32.xlu0 %v352, 124
    %v395 = vpop.permute.xlu0 %394
    %396 = vrot.lane.b32.xlu0 %v353, 124
    %v397 = vpop.permute.xlu0 %396
    %398 = vrot.lane.b32.xlu0 %v354, 124
    %v399 = vpop.permute.xlu0 %398
    %400 = vrot.lane.b32.xlu0 %v355, 124
    %v401 = vpop.permute.xlu0 %400
    %402 = vrot.lane.b32.xlu0 %v356, 124
    %v403 = vpop.permute.xlu0 %402
    %404 = vrot.lane.b32.xlu0 %v357, 124
    %v405 = vpop.permute.xlu0 %404
    %414 = vrot.lane.b32.xlu0 %v350, 122
    %v415 = vpop.permute.xlu0 %414
    %416 = vrot.lane.b32.xlu0 %v351, 122
    %v417 = vpop.permute.xlu0 %416
    %418 = vrot.lane.b32.xlu0 %v352, 122
    %v419 = vpop.permute.xlu0 %418
    %420 = vrot.lane.b32.xlu0 %v353, 122
    %v421 = vpop.permute.xlu0 %420
    %422 = vrot.lane.b32.xlu0 %v354, 122
    %v423 = vpop.permute.xlu0 %422
    %424 = vrot.lane.b32.xlu0 %v355, 122
    %v425 = vpop.permute.xlu0 %424
    %426 = vrot.lane.b32.xlu0 %v356, 122
    %v427 = vpop.permute.xlu0 %426
    %428 = vrot.lane.b32.xlu0 %v357, 122
    %v429 = vpop.permute.xlu0 %428
    %v438 = vrot.slane %v391, 4
    %v439 = vsel %vm262, %v438, %v350
    %v441 = vunpack.c.l.s4 1983009808
    %v442 = vunpack.c.0.s8 %v441
    %v443 = vperm.slane %v439, %v442
    %v444 = vrot.slane %v415, 4
    %v445 = vsel %vm262, %v444, %v367
    %v447 = vunpack.c.l.s4 1983009808
    %v448 = vunpack.c.0.s8 %v447
    %v449 = vperm.slane %v445, %v448
    %v450 = vrot.slane %v449, 4
    %v451 = vsel %vm262, %v450, %v443
    %v452 = vrot.slane %v443, 4
    %v453 = vsel %vm262, %v449, %v452
    %v455 = vunpack.c.l.s4 1934713408
    %v456 = vunpack.c.0.s8 %v455
    %v457 = vperm.slane %v451, %v456
    %v459 = vunpack.c.l.s4 1934713408
    %v460 = vunpack.c.0.s8 %v459
    %v461 = vperm.slane %v453, %v460
    %v462 = vrot.slane %v457, 4
    %v463 = vsel %vm262, 0.0, %v462
    %v464 = vrot.slane %v461, 4
    %v465 = vsel %vm262, 0.0, %v464
    %v466 = vrot.slane %v393, 4
    %v467 = vsel %vm262, %v466, %v351
    %v469 = vunpack.c.l.s4 1983009808
    %v470 = vunpack.c.0.s8 %v469
    %v471 = vperm.slane %v467, %v470
    %v472 = vrot.slane %v417, 4
    %v473 = vsel %vm262, %v472, %v369
    %v475 = vunpack.c.l.s4 1983009808
    %v476 = vunpack.c.0.s8 %v475
    %v477 = vperm.slane %v473, %v476
    %v478 = vrot.slane %v477, 4
    %v479 = vsel %vm262, %v478, %v471
    %v480 = vrot.slane %v471, 4
    %v481 = vsel %vm262, %v477, %v480
    %v483 = vunpack.c.l.s4 1934713408
    %v484 = vunpack.c.0.s8 %v483
    %v485 = vperm.slane %v479, %v484
    %v487 = vunpack.c.l.s4 1934713408
    %v488 = vunpack.c.0.s8 %v487
    %v489 = vperm.slane %v481, %v488
    %v490 = vrot.slane %v485, 4
    %v491 = vsel %vm262, 0.0, %v490
    %v492 = vrot.slane %v489, 4
    %v493 = vsel %vm262, 0.0, %v492
    %v494 = vrot.slane %v395, 4
    %v495 = vsel %vm262, %v494, %v352
    %v497 = vunpack.c.l.s4 1983009808
    %v498 = vunpack.c.0.s8 %v497
    %v499 = vperm.slane %v495, %v498
    %v500 = vrot.slane %v419, 4
    %v501 = vsel %vm262, %v500, %v371
    %v503 = vunpack.c.l.s4 1983009808
    %v504 = vunpack.c.0.s8 %v503
    %v505 = vperm.slane %v501, %v504
    %v506 = vrot.slane %v505, 4
    %v507 = vsel %vm262, %v506, %v499
    %v508 = vrot.slane %v499, 4
    %v509 = vsel %vm262, %v505, %v508
    %v511 = vunpack.c.l.s4 1934713408
    %v512 = vunpack.c.0.s8 %v511
    %v513 = vperm.slane %v507, %v512
    %v515 = vunpack.c.l.s4 1934713408
    %v516 = vunpack.c.0.s8 %v515
    %v517 = vperm.slane %v509, %v516
    %v518 = vrot.slane %v513, 4
    %v519 = vsel %vm262, 0.0, %v518
    %v520 = vrot.slane %v517, 4
    %v521 = vsel %vm262, 0.0, %v520
    %v522 = vrot.slane %v397, 4
    %v523 = vsel %vm262, %v522, %v353
    %v525 = vunpack.c.l.s4 1983009808
    %v526 = vunpack.c.0.s8 %v525
    %v527 = vperm.slane %v523, %v526
    %v528 = vrot.slane %v421, 4
    %v529 = vsel %vm262, %v528, %v373
    %v531 = vunpack.c.l.s4 1983009808
    %v532 = vunpack.c.0.s8 %v531
    %v533 = vperm.slane %v529, %v532
    %v534 = vrot.slane %v533, 4
    %v535 = vsel %vm262, %v534, %v527
    %v536 = vrot.slane %v527, 4
    %v537 = vsel %vm262, %v533, %v536
    %v539 = vunpack.c.l.s4 1934713408
    %v540 = vunpack.c.0.s8 %v539
    %v541 = vperm.slane %v535, %v540
    %v543 = vunpack.c.l.s4 1934713408
    %v544 = vunpack.c.0.s8 %v543
    %v545 = vperm.slane %v537, %v544
    %v546 = vrot.slane %v541, 4
    %v547 = vsel %vm262, 0.0, %v546
    %v548 = vrot.slane %v545, 4
    %v549 = vsel %vm262, 0.0, %v548
    %v550 = vrot.slane %v399, 4
    %v551 = vsel %vm262, %v550, %v354
    %v553 = vunpack.c.l.s4 1983009808
    %v554 = vunpack.c.0.s8 %v553
    %v555 = vperm.slane %v551, %v554
    %v556 = vrot.slane %v423, 4
    %v557 = vsel %vm262, %v556, %v375
    %v559 = vunpack.c.l.s4 1983009808
    %v560 = vunpack.c.0.s8 %v559
    %v561 = vperm.slane %v557, %v560
    %v562 = vrot.slane %v561, 4
    %v563 = vsel %vm262, %v562, %v555
    %v564 = vrot.slane %v555, 4
    %v565 = vsel %vm262, %v561, %v564
    %v567 = vunpack.c.l.s4 1934713408
    %v568 = vunpack.c.0.s8 %v567
    %v569 = vperm.slane %v563, %v568
    %v571 = vunpack.c.l.s4 1934713408
    %v572 = vunpack.c.0.s8 %v571
    %v573 = vperm.slane %v565, %v572
    %v574 = vrot.slane %v569, 4
    %v575 = vsel %vm262, 0.0, %v574
    %v576 = vrot.slane %v573, 4
    %v577 = vsel %vm262, 0.0, %v576
    %v578 = vrot.slane %v401, 4
    %v579 = vsel %vm262, %v578, %v355
    %v581 = vunpack.c.l.s4 1983009808
    %v582 = vunpack.c.0.s8 %v581
    %v583 = vperm.slane %v579, %v582
    %v584 = vrot.slane %v425, 4
    %v585 = vsel %vm262, %v584, %v377
    %v587 = vunpack.c.l.s4 1983009808
    %v588 = vunpack.c.0.s8 %v587
    %v589 = vperm.slane %v585, %v588
    %v590 = vrot.slane %v589, 4
    %v591 = vsel %vm262, %v590, %v583
    %v592 = vrot.slane %v583, 4
    %v593 = vsel %vm262, %v589, %v592
    %v595 = vunpack.c.l.s4 1934713408
    %v596 = vunpack.c.0.s8 %v595
    %v597 = vperm.slane %v591, %v596
    %v599 = vunpack.c.l.s4 1934713408
    %v600 = vunpack.c.0.s8 %v599
    %v601 = vperm.slane %v593, %v600
    %v602 = vrot.slane %v597, 4
    %v603 = vsel %vm262, 0.0, %v602
    %v604 = vrot.slane %v601, 4
    %v605 = vsel %vm262, 0.0, %v604
    %v606 = vrot.slane %v403, 4
    %v607 = vsel %vm262, %v606, %v356
    %v609 = vunpack.c.l.s4 1983009808
    %v610 = vunpack.c.0.s8 %v609
    %v611 = vperm.slane %v607, %v610
    %v612 = vrot.slane %v427, 4
    %v613 = vsel %vm262, %v612, %v379
    %v615 = vunpack.c.l.s4 1983009808
    %v616 = vunpack.c.0.s8 %v615
    %v617 = vperm.slane %v613, %v616
    %v618 = vrot.slane %v617, 4
    %v619 = vsel %vm262, %v618, %v611
    %v620 = vrot.slane %v611, 4
    %v621 = vsel %vm262, %v617, %v620
    %v623 = vunpack.c.l.s4 1934713408
    %v624 = vunpack.c.0.s8 %v623
    %v625 = vperm.slane %v619, %v624
    %v627 = vunpack.c.l.s4 1934713408
    %v628 = vunpack.c.0.s8 %v627
    %v629 = vperm.slane %v621, %v628
    %v630 = vrot.slane %v625, 4
    %v631 = vsel %vm262, 0.0, %v630
    %v632 = vrot.slane %v629, 4
    %v633 = vsel %vm262, 0.0, %v632
    %v634 = vrot.slane %v405, 4
    %v635 = vsel %vm262, %v634, %v357
    %v637 = vunpack.c.l.s4 1983009808
    %v638 = vunpack.c.0.s8 %v637
    %v639 = vperm.slane %v635, %v638
    %v640 = vrot.slane %v429, 4
    %v641 = vsel %vm262, %v640, %v381
    %v643 = vunpack.c.l.s4 1983009808
    %v644 = vunpack.c.0.s8 %v643
    %v645 = vperm.slane %v641, %v644
    %v646 = vrot.slane %v645, 4
    %v647 = vsel %vm262, %v646, %v639
    %v648 = vrot.slane %v639, 4
    %v649 = vsel %vm262, %v645, %v648
    %v651 = vunpack.c.l.s4 1934713408
    %v652 = vunpack.c.0.s8 %v651
    %v653 = vperm.slane %v647, %v652
    %v655 = vunpack.c.l.s4 1934713408
    %v656 = vunpack.c.0.s8 %v655
    %v657 = vperm.slane %v649, %v656
    %v658 = vrot.slane %v653, 4
    %v659 = vsel %vm262, 0.0, %v658
    %v660 = vrot.slane %v657, 4
    %v661 = vsel %vm262, 0.0, %v660
    %vm662 = vcmask 11264
    %v663 = vsel %vm662, %v457, -inf
    %664 = vmax.xlane.f32.xlu0 %v663
    %v665 = vpop.xlane.xlu0 %664
    %v666 = vsel %vm662, %v463, -inf
    %667 = vmax.xlane.f32.xlu0 %v666
    %v668 = vpop.xlane.xlu0 %667
    %v669 = vsel %vm662, %v461, -inf
    %670 = vmax.xlane.f32.xlu0 %v669
    %v671 = vpop.xlane.xlu0 %670
    %v672 = vsel %vm662, %v465, -inf
    %673 = vmax.xlane.f32.xlu0 %v672
    %v674 = vpop.xlane.xlu0 %673
    %v675 = vsel %vm662, %v485, -inf
    %676 = vmax.xlane.f32.xlu0 %v675
    %v677 = vpop.xlane.xlu0 %676
    %v678 = vsel %vm662, %v491, -inf
    %679 = vmax.xlane.f32.xlu0 %v678
    %v680 = vpop.xlane.xlu0 %679
    %v681 = vsel %vm662, %v489, -inf
    %682 = vmax.xlane.f32.xlu0 %v681
    %v683 = vpop.xlane.xlu0 %682
    %v684 = vsel %vm662, %v493, -inf
    %685 = vmax.xlane.f32.xlu0 %v684
    %v686 = vpop.xlane.xlu0 %685
    %v687 = vsel %vm662, %v513, -inf
    %688 = vmax.xlane.f32.xlu0 %v687
    %v689 = vpop.xlane.xlu0 %688
    %v690 = vsel %vm662, %v519, -inf
    %691 = vmax.xlane.f32.xlu0 %v690
    %v692 = vpop.xlane.xlu0 %691
    %v693 = vsel %vm662, %v517, -inf
    %694 = vmax.xlane.f32.xlu0 %v693
    %v695 = vpop.xlane.xlu0 %694
    %v696 = vsel %vm662, %v521, -inf
    %697 = vmax.xlane.f32.xlu0 %v696
    %v698 = vpop.xlane.xlu0 %697
    %v699 = vsel %vm662, %v541, -inf
    %700 = vmax.xlane.f32.xlu0 %v699
    %v701 = vpop.xlane.xlu0 %700
    %v702 = vsel %vm662, %v547, -inf
    %703 = vmax.xlane.f32.xlu0 %v702
    %v704 = vpop.xlane.xlu0 %703
    %v705 = vsel %vm662, %v545, -inf
    %706 = vmax.xlane.f32.xlu0 %v705
    %v707 = vpop.xlane.xlu0 %706
    %v708 = vsel %vm662, %v549, -inf
    %709 = vmax.xlane.f32.xlu0 %v708
    %v710 = vpop.xlane.xlu0 %709
    %v711 = vsel %vm662, %v569, -inf
    %712 = vmax.xlane.f32.xlu0 %v711
    %v713 = vpop.xlane.xlu0 %712
    %v714 = vsel %vm662, %v575, -inf
    %715 = vmax.xlane.f32.xlu0 %v714
    %v716 = vpop.xlane.xlu0 %715
    %v717 = vsel %vm662, %v573, -inf
    %718 = vmax.xlane.f32.xlu0 %v717
    %v719 = vpop.xlane.xlu0 %718
    %v720 = vsel %vm662, %v577, -inf
    %721 = vmax.xlane.f32.xlu0 %v720
    %v722 = vpop.xlane.xlu0 %721
    %v723 = vsel %vm662, %v597, -inf
    %724 = vmax.xlane.f32.xlu0 %v723
    %v725 = vpop.xlane.xlu0 %724
    %v726 = vsel %vm662, %v603, -inf
    %727 = vmax.xlane.f32.xlu0 %v726
    %v728 = vpop.xlane.xlu0 %727
    %v729 = vsel %vm662, %v601, -inf
    %730 = vmax.xlane.f32.xlu0 %v729
    %v731 = vpop.xlane.xlu0 %730
    %v732 = vsel %vm662, %v605, -inf
    %733 = vmax.xlane.f32.xlu0 %v732
    %v734 = vpop.xlane.xlu0 %733
    %v735 = vsel %vm662, %v625, -inf
    %736 = vmax.xlane.f32.xlu0 %v735
    %v737 = vpop.xlane.xlu0 %736
    %v738 = vsel %vm662, %v631, -inf
    %739 = vmax.xlane.f32.xlu0 %v738
    %v740 = vpop.xlane.xlu0 %739
    %v741 = vsel %vm662, %v629, -inf
    %742 = vmax.xlane.f32.xlu0 %v741
    %v743 = vpop.xlane.xlu0 %742
    %v744 = vsel %vm662, %v633, -inf
    %745 = vmax.xlane.f32.xlu0 %v744
    %v746 = vpop.xlane.xlu0 %745
    %v747 = vsel %vm662, %v653, -inf
    %748 = vmax.xlane.f32.xlu0 %v747
    %v749 = vpop.xlane.xlu0 %748
    %v750 = vsel %vm662, %v659, -inf
    %751 = vmax.xlane.f32.xlu0 %v750
    %v752 = vpop.xlane.xlu0 %751
    %v753 = vsel %vm662, %v657, -inf
    %754 = vmax.xlane.f32.xlu0 %v753
    %v755 = vpop.xlane.xlu0 %754
    %v756 = vsel %vm662, %v661, -inf
    %757 = vmax.xlane.f32.xlu0 %v756
    %v758 = vpop.xlane.xlu0 %757
    %v759 = vld [vmem:[%s1] sm:$0x1]
    %792 = vst [vmem:[#allocation1] ss:$2 sm:$0xff] %v665
    %s793 = scalar_lea.vmem [#allocation1], 1
    %794 = vst [vmem:[%s793] ss:$2 sm:$0xff] %v668
    %s795 = scalar_lea.vmem [#allocation1], 16
    %796 = vst [vmem:[%s795] ss:$2 sm:$0xff] %v671
    %s797 = scalar_lea.vmem [#allocation1], 17
    %798 = vst [vmem:[%s797] ss:$2 sm:$0xff] %v674
    %s799 = scalar_lea.vmem [#allocation1], 32
    %800 = vst [vmem:[%s799] ss:$2 sm:$0xff] %v677
    %s801 = scalar_lea.vmem [#allocation1], 33
    %802 = vst [vmem:[%s801] ss:$2 sm:$0xff] %v680
    %s803 = scalar_lea.vmem [#allocation1], 48
    %804 = vst [vmem:[%s803] ss:$2 sm:$0xff] %v683
    %s805 = scalar_lea.vmem [#allocation1], 49
    %806 = vst [vmem:[%s805] ss:$2 sm:$0xff] %v686
    %v807 = vld.sshfl [vmem:[#allocation1] sm:$0xff pattern:$0x75316420]
    %v808 = vld.sshfl [vmem:[#allocation1 + $0x10] sm:$0xff pattern:$0x75316420]
    %v809 = vld.sshfl [vmem:[#allocation1 + $0x20] sm:$0xff pattern:$0x75316420]
    %v810 = vld.sshfl [vmem:[#allocation1 + $0x30] sm:$0xff pattern:$0x75316420]
    %811 = vst [vmem:[#allocation1] ss:$2 sm:$0xff] %v689
    %812 = vst [vmem:[%s793] ss:$2 sm:$0xff] %v692
    %813 = vst [vmem:[%s795] ss:$2 sm:$0xff] %v695
    %814 = vst [vmem:[%s797] ss:$2 sm:$0xff] %v698
    %815 = vst [vmem:[%s799] ss:$2 sm:$0xff] %v701
    %816 = vst [vmem:[%s801] ss:$2 sm:$0xff] %v704
    %817 = vst [vmem:[%s803] ss:$2 sm:$0xff] %v707
    %818 = vst [vmem:[%s805] ss:$2 sm:$0xff] %v710
    %v819 = vld.sshfl [vmem:[#allocation1] sm:$0xff pattern:$0x75316420]
    %v820 = vld.sshfl [vmem:[#allocation1 + $0x10] sm:$0xff pattern:$0x75316420]
    %v821 = vld.sshfl [vmem:[#allocation1 + $0x20] sm:$0xff pattern:$0x75316420]
    %v822 = vld.sshfl [vmem:[#allocation1 + $0x30] sm:$0xff pattern:$0x75316420]
    %823 = vst [vmem:[#allocation1] ss:$2 sm:$0xff] %v713
    %824 = vst [vmem:[%s793] ss:$2 sm:$0xff] %v716
    %825 = vst [vmem:[%s795] ss:$2 sm:$0xff] %v719
    %826 = vst [vmem:[%s797] ss:$2 sm:$0xff] %v722
    %827 = vst [vmem:[%s799] ss:$2 sm:$0xff] %v725
    %828 = vst [vmem:[%s801] ss:$2 sm:$0xff] %v728
    %829 = vst [vmem:[%s803] ss:$2 sm:$0xff] %v731
    %830 = vst [vmem:[%s805] ss:$2 sm:$0xff] %v734
    %v831 = vld.sshfl [vmem:[#allocation1] sm:$0xff pattern:$0x75316420]
    %v832 = vld.sshfl [vmem:[#allocation1 + $0x10] sm:$0xff pattern:$0x75316420]
    %v833 = vld.sshfl [vmem:[#allocation1 + $0x20] sm:$0xff pattern:$0x75316420]
    %v834 = vld.sshfl [vmem:[#allocation1 + $0x30] sm:$0xff pattern:$0x75316420]
    %835 = vst [vmem:[#allocation1] ss:$2 sm:$0xff] %v737
    %836 = vst [vmem:[%s793] ss:$2 sm:$0xff] %v740
    %837 = vst [vmem:[%s795] ss:$2 sm:$0xff] %v743
    %838 = vst [vmem:[%s797] ss:$2 sm:$0xff] %v746
    %839 = vst [vmem:[%s799] ss:$2 sm:$0xff] %v749
    %840 = vst [vmem:[%s801] ss:$2 sm:$0xff] %v752
    %841 = vst [vmem:[%s803] ss:$2 sm:$0xff] %v755
    %842 = vst [vmem:[%s805] ss:$2 sm:$0xff] %v758
    %v843 = vld.sshfl [vmem:[#allocation1] sm:$0xff pattern:$0x75316420]
    %v844 = vld.sshfl [vmem:[#allocation1 + $0x10] sm:$0xff pattern:$0x75316420]
    %v845 = vld.sshfl [vmem:[#allocation1 + $0x20] sm:$0xff pattern:$0x75316420]
    %v846 = vld.sshfl [vmem:[#allocation1 + $0x30] sm:$0xff pattern:$0x75316420]
    %847 = vset.pattern.permute.xlu0 0
    %848 = vperm.xlu0 %847, %v807
    %v849 = vpop.permute.xlu0 %848
    %850 = vset.pattern.permute.xlu0 0
    %851 = vperm.xlu0 %850, %v808
    %v852 = vpop.permute.xlu0 %851
    %853 = vset.pattern.permute.xlu0 0
    %854 = vperm.xlu0 %853, %v809
    %v855 = vpop.permute.xlu0 %854
    %856 = vset.pattern.permute.xlu0 0
    %857 = vperm.xlu0 %856, %v810
    %v858 = vpop.permute.xlu0 %857
    %859 = vset.pattern.permute.xlu0 0
    %860 = vperm.xlu0 %859, %v819
    %v861 = vpop.permute.xlu0 %860
    %862 = vset.pattern.permute.xlu0 0
    %863 = vperm.xlu0 %862, %v820
    %v864 = vpop.permute.xlu0 %863
    %865 = vset.pattern.permute.xlu0 0
    %866 = vperm.xlu0 %865, %v821
    %v867 = vpop.permute.xlu0 %866
    %868 = vset.pattern.permute.xlu0 0
    %869 = vperm.xlu0 %868, %v822
    %v870 = vpop.permute.xlu0 %869
    %871 = vset.pattern.permute.xlu0 0
    %872 = vperm.xlu0 %871, %v831
    %v873 = vpop.permute.xlu0 %872
    %874 = vset.pattern.permute.xlu0 0
    %875 = vperm.xlu0 %874, %v832
    %v876 = vpop.permute.xlu0 %875
    %877 = vset.pattern.permute.xlu0 0
    %878 = vperm.xlu0 %877, %v833
    %v879 = vpop.permute.xlu0 %878
    %880 = vset.pattern.permute.xlu0 0
    %881 = vperm.xlu0 %880, %v834
    %v882 = vpop.permute.xlu0 %881
    %883 = vset.pattern.permute.xlu0 0
    %884 = vperm.xlu0 %883, %v843
    %v885 = vpop.permute.xlu0 %884
    %886 = vset.pattern.permute.xlu0 0
    %887 = vperm.xlu0 %886, %v844
    %v888 = vpop.permute.xlu0 %887
    %889 = vset.pattern.permute.xlu0 0
    %890 = vperm.xlu0 %889, %v845
    %v891 = vpop.permute.xlu0 %890
    %892 = vset.pattern.permute.xlu0 0
    %893 = vperm.xlu0 %892, %v846
    %v894 = vpop.permute.xlu0 %893
    %v895 = vlaneseq
    %v896 = vand.u32 %v895, 127
    %v897 = vperm.slane %v849, %v896
    %v898 = vadd.s32 %v896, 4294967288
    %v899 = vperm.slane %v852, %v898
    %vm900 = vcmask 130112
    %v901 = vsel %vm900, %v899, %v897
    %v902 = vadd.s32 %v896, 4294967280
    %v903 = vperm.slane %v855, %v902
    %vm904 = vcmask 195712
    %v905 = vsel %vm904, %v903, %v901
    %v906 = vadd.s32 %v896, 4294967272
    %v907 = vperm.slane %v858, %v906
    %vm908 = vcmask 261312
    %v909 = vsel %vm908, %v907, %v905
    %v910 = vadd.s32 %v896, 4294967264
    %v911 = vperm.slane %v861, %v910
    %vm912 = vcmask 326912
    %v913 = vsel %vm912, %v911, %v909
    %v914 = vadd.s32 %v896, 4294967256
    %v915 = vperm.slane %v864, %v914
    %vm916 = vcmask 392512
    %v917 = vsel %vm916, %v915, %v913
    %v918 = vadd.s32 %v896, 4294967248
    %v919 = vperm.slane %v867, %v918
    %vm920 = vcmask 458112
    %v921 = vsel %vm920, %v919, %v917
    %v922 = vadd.s32 %v896, 4294967240
    %v923 = vperm.slane %v870, %v922
    %vm924 = vcmask 523712
    %v925 = vsel %vm924, %v923, %v921
    %v926 = vadd.s32 %v896, 4294967232
    %v927 = vperm.slane %v873, %v926
    %vm928 = vcmask 589312
    %v929 = vsel %vm928, %v927, %v925
    %v930 = vadd.s32 %v896, 4294967224
    %v931 = vperm.slane %v876, %v930
    %vm932 = vcmask 654912
    %v933 = vsel %vm932, %v931, %v929
    %v934 = vadd.s32 %v896, 4294967216
    %v935 = vperm.slane %v879, %v934
    %vm936 = vcmask 720512
    %v937 = vsel %vm936, %v935, %v933
    %v938 = vadd.s32 %v896, 4294967208
    %v939 = vperm.slane %v882, %v938
    %vm940 = vcmask 786112
    %v941 = vsel %vm940, %v939, %v937
    %v942 = vadd.s32 %v896, 4294967200
    %v943 = vperm.slane %v885, %v942
    %vm944 = vcmask 851712
    %v945 = vsel %vm944, %v943, %v941
    %v946 = vadd.s32 %v896, 4294967192
    %v947 = vperm.slane %v888, %v946
    %vm948 = vcmask 917312
    %v949 = vsel %vm948, %v947, %v945
    %v950 = vadd.s32 %v896, 4294967184
    %v951 = vperm.slane %v891, %v950
    %vm952 = vcmask 982912
    %v953 = vsel %vm952, %v951, %v949
    %v954 = vadd.s32 %v896, 4294967176
    %v955 = vperm.slane %v894, %v954
    %vm956 = vcmask 1048512
    %v957 = vsel %vm956, %v955, %v953
    %v959 = vld [vmem:[%s6] sm:$0xff]
    %v960 = vld [vmem:[%s6 + $0x8] sm:$0xff]
    %v961 = vld [vmem:[%s6 + $0x10] sm:$0xff]
    %v962 = vld [vmem:[%s6 + $0x18] sm:$0xff]
    %v963 = vld [vmem:[%s6 + $0x20] sm:$0xff]
    %v964 = vld [vmem:[%s6 + $0x28] sm:$0xff]
    %v965 = vld [vmem:[%s6 + $0x30] sm:$0xff]
    %v966 = vld [vmem:[%s6 + $0x38] sm:$0xff]
    %v967 = vld [vmem:[%s6 + $0x40] sm:$0xff]
    %v968 = vld [vmem:[%s6 + $0x48] sm:$0xff]
    %v969 = vld [vmem:[%s6 + $0x50] sm:$0xff]
    %v970 = vld [vmem:[%s6 + $0x58] sm:$0xff]
    %v971 = vld [vmem:[%s6 + $0x60] sm:$0xff]
    %v972 = vld [vmem:[%s6 + $0x68] sm:$0xff]
    %v973 = vld [vmem:[%s6 + $0x70] sm:$0xff]
    %v974 = vld [vmem:[%s6 + $0x78] sm:$0xff]
    %v975 = vld [vmem:[%s6 + $0x80] sm:$0xff]
    %v976 = vld [vmem:[%s7] sm:$0x1]
    %vm977 = vcmask 64512
    %v979 = vsel %vm977, %v759, 0
    %981 = vmatpush.msra.mxu0 %v974
    %982 = vmatpush.msra.mxu0 %v973
    %983 = vmatpush.msra.mxu0 %v972
    %984 = vmatpush.msra.mxu0 %v971
    %985 = vmatpush.msra.mxu0 %v970
    %986 = vmatpush.msra.mxu0 %v969
    %987 = vmatpush.msra.mxu0 %v968
    %988 = vmatpush.msra.mxu0 %v967
    %989 = vmatpush.msra.mxu0 %v966
    %990 = vmatpush.msra.mxu0 %v965
    %991 = vmatpush.msra.mxu0 %v964
    %992 = vmatpush.msra.mxu0 %v963
    %993 = vmatpush.msra.mxu0 %v962
    %994 = vmatpush.msra.mxu0 %v961
    %995 = vmatpush.msra.mxu0 %v960
    %996 = vmatpush.msra.mxu0 %v959
    %997 = vmatmul.f32.gmra.mxu0 %v957
    %v998 = vpop.f32.mrf.mxu0
    %v999 = vadd.f32 %v976, %v998
    %1000 = vdwg.mxu0
    %1001 = vmatpush.msra.mxu0 0.0
    %1002 = vmatpush.msra.mxu0 0.0
    %1003 = vmatpush.msra.mxu0 0.0
    %1004 = vmatpush.msra.mxu0 0.0
    %1005 = vmatpush.msra.mxu0 0.0
    %1006 = vmatpush.msra.mxu0 0.0
    %1007 = vmatpush.msra.mxu0 0.0
    %1008 = vmatpush.msra.mxu0 0.0
    %1009 = vmatpush.msra.mxu0 0.0
    %1010 = vmatpush.msra.mxu0 0.0
    %1011 = vmatpush.msra.mxu0 0.0
    %1012 = vmatpush.msra.mxu0 0.0
    %1013 = vmatpush.msra.mxu0 0.0
    %1014 = vmatpush.msra.mxu0 0.0
    %1015 = vmatpush.msra.mxu0 0.0
    %1016 = vmatpush.msra.mxu0 %v975
    %1017 = vmatmul.f32.gmra.mxu0 %v979
    %v1018 = vpop.f32.mrf.mxu0
    %v1019 = vadd.f32 %v999, %v1018
    %1020 = vdwg.mxu0
    %v1021 = vmax.f32 %v1019, 0.0
    %v1022 = vld [vmem:[%s8] sm:$0xff]
    %v1023 = vld [vmem:[%s8 + $0x8] sm:$0xff]
    %v1024 = vld [vmem:[%s8 + $0x10] sm:$0xff]
    %v1025 = vld [vmem:[%s8 + $0x18] sm:$0xff]
    %v1026 = vld [vmem:[%s8 + $0x20] sm:$0xff]
    %v1027 = vld [vmem:[%s8 + $0x28] sm:$0xff]
    %v1028 = vld [vmem:[%s8 + $0x30] sm:$0xff]
    %v1029 = vld [vmem:[%s8 + $0x38] sm:$0xff]
    %v1030 = vld [vmem:[%s8 + $0x40] sm:$0xff]
    %v1031 = vld [vmem:[%s8 + $0x48] sm:$0xff]
    %v1032 = vld [vmem:[%s8 + $0x50] sm:$0xff]
    %v1033 = vld [vmem:[%s8 + $0x58] sm:$0xff]
    %v1034 = vld [vmem:[%s8 + $0x60] sm:$0xff]
    %v1035 = vld [vmem:[%s8 + $0x68] sm:$0xff]
    %v1036 = vld [vmem:[%s8 + $0x70] sm:$0xff]
    %v1037 = vld [vmem:[%s8 + $0x78] sm:$0xff]
    %v1038 = vld [vmem:[%s9] sm:$0x1]
    %1039 = vmatpush.msra.mxu0 %v1037
    %1040 = vmatpush.msra.mxu0 %v1036
    %1041 = vmatpush.msra.mxu0 %v1035
    %1042 = vmatpush.msra.mxu0 %v1034
    %1043 = vmatpush.msra.mxu0 %v1033
    %1044 = vmatpush.msra.mxu0 %v1032
    %1045 = vmatpush.msra.mxu0 %v1031
    %1046 = vmatpush.msra.mxu0 %v1030
    %1047 = vmatpush.msra.mxu0 %v1029
    %1048 = vmatpush.msra.mxu0 %v1028
    %1049 = vmatpush.msra.mxu0 %v1027
    %1050 = vmatpush.msra.mxu0 %v1026
    %1051 = vmatpush.msra.mxu0 %v1025
    %1052 = vmatpush.msra.mxu0 %v1024
    %1053 = vmatpush.msra.mxu0 %v1023
    %1054 = vmatpush.msra.mxu0 %v1022
    %1055 = vmatmul.f32.gmra.mxu0 %v1021
    %v1056 = vpop.f32.mrf.mxu0
    %v1057 = vadd.f32 %v1038, %v1056
    %1058 = vdwg.mxu0
    %vm1059 = vcmask 40960
    %v1060 = vsel %vm1059, %v1057, -inf
    %1061 = vmax.xlane.f32.xlu0 %v1060
    %v1062 = vpop.xlane.xlu0 %1061
    %v1063 = vsub.f32 %v1057, %v1062
    %v1064 = vmul.f32 %v1063, 1.442695
    %v1065 = vpow.pop %v1064
    %v1066 = vsel %vm1059, %v1065, 0.0
    %1067 = vadd.xlane.f32.xlu0 %v1066
    %v1068 = vpop.xlane.xlu0 %1067
    %v1069 = vrcp.pop %v1068
    %v1070 = vmul.f32 %v1068, %v1069
    %v1071 = vsub.f32 1.0, %v1070
    %v1072 = vmul.f32 %v1069, %v1071
    %v1073 = vadd.f32 %v1069, %v1072
    %vm1074 = vweird.f32 %v1068
    %vm1075 = vweird.f32 %v1069
    %vm1076 = vmor %vm1074, %vm1075
    %v1077 = vsel %vm1076, %v1069, %v1073
    %v1078 = vand.u32 2147483647, %v1068
    %vm1079 = vcmp.eq.f32.partialorder %v1078, 8.507059e+37
    %v1080 = vand.u32 %v1068, 2147483648
    %v1081 = vor.u32 1.1754944e-38, %v1080
    %v1082 = vsel %vm1079, %v1081, %v1077
    %v1083 = vmul.f32 %v1065, %v1082
    %1084 = vst.msk [vmem:[#allocation7] sm:$0x1] %vm1059, %v1083
    %1086 = vrot.lane.b32.xlu0 %v1057, 122
    %v1087 = vpop.permute.xlu0 %1086
    %vm1089 = vcmask 0
    %1090 = vst.msk [vmem:[#allocation8] sm:$0x1] %vm1089, %v1087
    // Predicated region
    $region50: #{tpu_custom_call.1} parent=1 // pred_check
      _
    $region51: #{tpu_custom_call.1} parent=1 // pred_check_branch
      %1092 = sbr.rel (0) target = $region53
    $region52: #{tpu_custom_call.1} parent=1 // pred_region
      %1094 = vsyncadd [#allocation4], 0
      %s1096 = sshll.u32 [#allocation7], 4
      %s1097 = int_to_ptr.vmem [resolvable:$true] %s1096
      %s1098 = sshll.u32 %s10, 4
      %s1099 = int_to_ptr.hbm [resolvable:$true] %s1098
      %1101 = dma.vmem_to_hbm [thread:$0]  %s1097, 16, %s1099, [#allocation4]
    $region53: #{tpu_custom_call.1} parent=1 // pred_fallthru
      _
    // Predicated region
    $region54: #{tpu_custom_call.1} parent=1 // pred_check
      _
    $region55: #{tpu_custom_call.1} parent=1 // pred_check_branch
      %1103 = sbr.rel (0) target = $region57
    $region56: #{tpu_custom_call.1} parent=1 // pred_region
      %1105 = vsyncadd [#allocation9], 0
      %s1107 = sshll.u32 [#allocation8], 4
      %s1108 = int_to_ptr.vmem [resolvable:$true] %s1107
      %s1109 = sshll.u32 %s11, 4
      %s1110 = int_to_ptr.hbm [resolvable:$true] %s1109
      %1112 = dma.vmem_to_hbm [thread:$0]  %s1108, 16, %s1110, [#allocation9]
    $region57: #{tpu_custom_call.1} parent=1 // pred_fallthru
      _
    // Predicated region
    $region58: #{tpu_custom_call.1} parent=1 // pred_check
      _
    $region59: #{tpu_custom_call.1} parent=1 // pred_check_branch
      %1114 = sbr.rel (0) target = $region61
    $region60: #{tpu_custom_call.1} parent=1 // pred_region
      %1116 = dma.done [#allocation4], 16
    $region61: #{tpu_custom_call.1} parent=1 // pred_fallthru
      _
    // Predicated region
    $region62: #{tpu_custom_call.1} parent=1 // pred_check
      _
    $region63: #{tpu_custom_call.1} parent=1 // pred_check_branch
      %1118 = sbr.rel (0) target = $region65
    $region64: #{tpu_custom_call.1} parent=1 // pred_region
      %1120 = dma.done [#allocation9], 16
    $region65: #{tpu_custom_call.1} parent=1 // pred_fallthru
      _
    %1121 = vsyncpa [#allocation3], 1
    %1122 = vsyncpa [#allocation6], 1
    %1123 = vsyncpa [#allocation4], 1
    %1124 = vsyncpa [#allocation9], 1

</llo_original>
